<compile_context>
chip_gen: v7x
topology: tpu7x:2x2x1
jax: 0.10.0
libtpu: 0.0.40
codegen_flags: <defaults>
</compile_context>

<pallas_src>
import jax
import jax.numpy as jnp
from jax.experimental import pallas as pl
from jax.experimental.pallas import tpu as pltpu


def conv_dw_conv(x_nchw, w_dw, dw_scale, dw_bias, w_pw, pw_scale, pw_bias):
    """x_nchw: (N, Cin, H, W) float32.  Returns (N, Cout, H, W) float32."""
    n, cin, h, w = x_nchw.shape
    cout = w_pw.shape[1]

    # ---- wrapper-side constant folding & layout plumbing (outside pallas_call) ----
    # Fold BN scales into the conv weights (folded once, zero runtime cost).
    wdw_f = w_dw * dw_scale[0]        # (3, 3, Cin)
    wpw_f = w_pw * pw_scale           # (Cin, Cout), per-output-column scale

    # Lane-dense input slab: (N, H, W*Cin).
    x = jnp.transpose(x_nchw, (0, 2, 3, 1)).reshape(n, h, w * cin)

    # Depthwise taps tiled across W so one (1, W*Cin) row multiplies a whole slab.
    wdw_taps = jnp.tile(wdw_f.reshape(9, cin), (1, w))    # (9, W*Cin)
    dwb_row = jnp.tile(dw_bias, (1, w))                   # (1, W*Cin)
    pwb_row = jnp.tile(pw_bias, (1, w))                   # (1, W*Cout)

    # Pointwise 1x1 conv as a block-diagonal matmul in the flattened lane layout:
    #   (H, W*Cin) @ (W*Cin, W*Cout)  ->  K=64, N=128 instead of K=4, N=8.
    # bf16 operands for the MXU; accumulation stays f32 (preferred_element_type).
    wblk = jnp.einsum('wv,cd->wcvd', jnp.eye(w, dtype=jnp.float32), wpw_f)
    wblk = wblk.reshape(w * cin, w * cout).astype(jnp.bfloat16)

    def kernel(x_ref, wdw_ref, dwb_ref, wblk_ref, pwb_ref, o_ref, xpad_ref):
        # x_ref   : (1, H, W*Cin)        one image, lane-dense
        # wdw_ref : (9, W*Cin)           depthwise taps (BN scale folded, W-tiled)
        # dwb_ref : (1, W*Cin)           depthwise BN bias (W-tiled)
        # wblk_ref: (W*Cin, W*Cout) bf16 block-diag pointwise weights (BN folded)
        # pwb_ref : (1, W*Cout)          pointwise BN bias (W-tiled)
        # o_ref   : (1, H, W*Cout)
        # xpad_ref: (H+2, (W+2)*Cin)     VMEM scratch for the zero halo
        # Build the zero halo in VMEM instead of materializing a padded HBM copy.
        xpad_ref[...] = jnp.zeros_like(xpad_ref)
        xpad_ref[1:h + 1, cin:cin + w * cin] = x_ref[0]
        xp = xpad_ref[...]                                # (H+2, (W+2)*Cin)
        wtaps = wdw_ref[...]                              # (9, W*Cin)

        # Depthwise 3x3 on the VPU: 3 lane shifts (one per dw), each reused for
        # the 3 row offsets dh (row slicing is just a sublane offset).
        acc = jnp.zeros((h, w * cin), jnp.float32)
        for dw in range(3):
            xs = xp[:, dw * cin: dw * cin + w * cin]      # (H+2, W*Cin)
            for dh in range(3):
                r = 3 * dh + dw
                acc = acc + xs[dh:dh + h, :] * wtaps[r:r + 1, :]
        y = jnp.maximum(acc + dwb_ref[...], 0.0)          # folded BN bias + ReLU

        # Pointwise 1x1 (+ folded BN scale) on the MXU, bf16 in / f32 accumulate.
        z = jnp.dot(y.astype(jnp.bfloat16), wblk_ref[...],
                    preferred_element_type=jnp.float32)
        # Lane-dense (H, W*Cout=128) store -> unmasked full-width vst.
        o_ref[0] = jnp.maximum(z + pwb_ref[...], 0.0)

    out_flat = pl.pallas_call(
        kernel,
        out_shape=jax.ShapeDtypeStruct((n, h, w * cout), jnp.float32),
        grid_spec=pltpu.PrefetchScalarGridSpec(
            num_scalar_prefetch=0,
            grid=(n,),
            in_specs=[
                pl.BlockSpec((1, h, w * cin), lambda b: (b, 0, 0)),
                pl.BlockSpec((9, w * cin), lambda b: (0, 0)),
                pl.BlockSpec((1, w * cin), lambda b: (0, 0)),
                pl.BlockSpec((w * cin, w * cout), lambda b: (0, 0)),
                pl.BlockSpec((1, w * cout), lambda b: (0, 0)),
            ],
            out_specs=pl.BlockSpec((1, h, w * cout), lambda b: (b, 0, 0)),
            scratch_shapes=[pltpu.VMEM((h + 2, (w + 2) * cin), jnp.float32)],
        ),
        compiler_params=pltpu.CompilerParams(
            dimension_semantics=("parallel",),
            vmem_limit_bytes=32 * 1024 * 1024,
        ),
    )(x, wdw_taps, dwb_row, wblk, pwb_row)

    out = out_flat.reshape(n, h, w, cout)
    return jnp.transpose(out, (0, 3, 1, 2))


def _fold_bn(gamma, beta, mean, var, eps=1e-5):
    scale = gamma / jnp.sqrt(var + eps)
    bias = beta - mean * scale
    return scale[None, :], bias[None, :]


def _reference(x_nchw, w_dw, dw_scale, dw_bias, w_pw, pw_scale, pw_bias):
    """Plain-JAX reference (NHWC convs via lax) for correctness checking."""
    x = jnp.transpose(x_nchw, (0, 2, 3, 1))  # NHWC
    cin = x.shape[-1]
    k_dw = w_dw[:, :, None, :]  # (3, 3, 1, Cin), HWIO, groups=Cin
    y = jax.lax.conv_general_dilated(
        x, k_dw, window_strides=(1, 1), padding=((1, 1), (1, 1)),
        dimension_numbers=("NHWC", "HWIO", "NHWC"), feature_group_count=cin)
    y = jnp.maximum(y * dw_scale[0] + dw_bias[0], 0.0)
    z = jnp.einsum("nhwc,cd->nhwd", y, w_pw)
    z = jnp.maximum(z * pw_scale[0] + pw_bias[0], 0.0)
    return jnp.transpose(z, (0, 3, 1, 2))


if __name__ == "__main__":
    key = jax.random.PRNGKey(0)
    keys = jax.random.split(key, 10)

    N, Cin, Cout, H, W = 2, 4, 8, 16, 16

    x = jax.random.normal(keys[0], (N, Cin, H, W), dtype=jnp.float32)

    # depthwise weights: PyTorch shape (Cin, 1, 3, 3) -> ours (3, 3, Cin)
    w_dw_t = jax.random.normal(keys[1], (Cin, 1, 3, 3), dtype=jnp.float32) * 0.1
    w_dw = jnp.transpose(w_dw_t[:, 0], (1, 2, 0))  # (3, 3, Cin)

    # pointwise weights: PyTorch shape (Cout, Cin, 1, 1) -> ours (Cin, Cout)
    w_pw_t = jax.random.normal(keys[2], (Cout, Cin, 1, 1), dtype=jnp.float32) * 0.1
    w_pw = jnp.transpose(w_pw_t[:, :, 0, 0], (1, 0))  # (Cin, Cout)

    # BatchNorm parameters (inference-mode fold).  Deterministic, nontrivial.
    g1 = 1.0 + 0.1 * jax.random.normal(keys[3], (Cin,), dtype=jnp.float32)
    b1 = 0.1 * jax.random.normal(keys[4], (Cin,), dtype=jnp.float32)
    m1 = 0.1 * jax.random.normal(keys[5], (Cin,), dtype=jnp.float32)
    v1 = 1.0 + 0.1 * jax.nn.softplus(jax.random.normal(keys[6], (Cin,), dtype=jnp.float32))

    g2 = 1.0 + 0.1 * jax.random.normal(keys[7], (Cout,), dtype=jnp.float32)
    b2 = 0.1 * jax.random.normal(keys[8], (Cout,), dtype=jnp.float32)
    m2 = jnp.zeros((Cout,), jnp.float32)
    v2 = jnp.ones((Cout,), jnp.float32)

    dw_scale, dw_bias = _fold_bn(g1, b1, m1, v1)
    pw_scale, pw_bias = _fold_bn(g2, b2, m2, v2)

    out = conv_dw_conv(x, w_dw, dw_scale, dw_bias, w_pw, pw_scale, pw_bias)
    out = jax.block_until_ready(out)

    ref = _reference(x, w_dw, dw_scale, dw_bias, w_pw, pw_scale, pw_bias)
    assert out.shape == (N, Cout, H, W)
    # bf16 MXU operands (f32 accumulation) per the perf review -> slightly
    # relaxed tolerance vs. the pure-f32 reference.
    assert jnp.allclose(out, ref, atol=1e-2, rtol=1e-2)

    print("KERNEL_OK")
</pallas_src>

<mosaic_0001>
module attributes {stable_mosaic.version = 11 : i64} {
  func.func @kernel(%arg0: i32, %arg1: memref<1x16x64xf32, #tpu.memory_space<vmem>>, %arg2: memref<9x64xf32, #tpu.memory_space<vmem>>, %arg3: memref<1x64xf32, #tpu.memory_space<vmem>>, %arg4: memref<64x128xbf16, #tpu.memory_space<vmem>>, %arg5: memref<1x128xf32, #tpu.memory_space<vmem>>, %arg6: memref<1x16x128xf32, #tpu.memory_space<vmem>>, %arg7: memref<18x72xf32, #tpu.memory_space<vmem>>) attributes {dimension_semantics = [#tpu.dimension_semantics<parallel>], iteration_bounds = array<i64: 2>, scalar_prefetch = 0 : i64, scratch_operands = 1 : i64, tpu.core_type = #tpu.core_type<tc>, window_params = [{transform_indices = @transform_0, window_bounds = array<i64: 1, 16, 64>}, {pipeline_mode = #tpu.pipeline_mode<synchronous>, transform_indices = @transform_1, window_bounds = array<i64: 9, 64>}, {pipeline_mode = #tpu.pipeline_mode<synchronous>, transform_indices = @transform_2, window_bounds = array<i64: 1, 64>}, {pipeline_mode = #tpu.pipeline_mode<synchronous>, transform_indices = @transform_3, window_bounds = array<i64: 64, 128>}, {pipeline_mode = #tpu.pipeline_mode<synchronous>, transform_indices = @transform_4, window_bounds = array<i64: 1, 128>}, {transform_indices = @transform_5, window_bounds = array<i64: 1, 16, 128>}]} {
    %cst = arith.constant 0.000000e+00 : f32
    %0 = vector.broadcast %cst : f32 to vector<18x72xf32>
    %c0 = arith.constant 0 : index
    %c0_0 = arith.constant 0 : index
    %1 = vector.load %arg7[%c0, %c0_0] : memref<18x72xf32, #tpu.memory_space<vmem>>, vector<18x72xf32>
    tpu.vector_store %arg7[%c0, %c0_0], %0 {strides = array<i32>} : memref<18x72xf32, #tpu.memory_space<vmem>>, vector<18x72xf32>,
    %c0_1 = arith.constant 0 : index
    %c0_2 = arith.constant 0 : index
    %c0_3 = arith.constant 0 : index
    %2 = vector.load %arg1[%c0_1, %c0_2, %c0_3] : memref<1x16x64xf32, #tpu.memory_space<vmem>>, vector<1x16x64xf32>
    %3 = vector.shape_cast %2 : vector<1x16x64xf32> to vector<16x64xf32>
    %c1 = arith.constant 1 : index
    %c4 = arith.constant 4 : index
    %4 = vector.load %arg7[%c1, %c4] : memref<18x72xf32, #tpu.memory_space<vmem>>, vector<16x64xf32>
    tpu.vector_store %arg7[%c1, %c4], %3 {strides = array<i32>} : memref<18x72xf32, #tpu.memory_space<vmem>>, vector<16x64xf32>,
    %c0_4 = arith.constant 0 : index
    %c0_5 = arith.constant 0 : index
    %5 = vector.load %arg7[%c0_4, %c0_5] : memref<18x72xf32, #tpu.memory_space<vmem>>, vector<18x72xf32>
    %c0_6 = arith.constant 0 : index
    %c0_7 = arith.constant 0 : index
    %6 = vector.load %arg2[%c0_6, %c0_7] : memref<9x64xf32, #tpu.memory_space<vmem>>, vector<9x64xf32>
    %cst_8 = arith.constant 0.000000e+00 : f32
    %7 = vector.broadcast %cst_8 : f32 to vector<16x64xf32>
    %8 = vector.extract_strided_slice %5 {offsets = [0, 0], sizes = [18, 64], strides = [1, 1]} : vector<18x72xf32> to vector<18x64xf32>
    %9 = vector.extract_strided_slice %8 {offsets = [0, 0], sizes = [16, 64], strides = [1, 1]} : vector<18x64xf32> to vector<16x64xf32>
    %10 = vector.extract_strided_slice %6 {offsets = [0, 0], sizes = [1, 64], strides = [1, 1]} : vector<9x64xf32> to vector<1x64xf32>
    %11 = vector.broadcast %10 : vector<1x64xf32> to vector<16x64xf32>
    %12 = arith.mulf %9, %11 : vector<16x64xf32>
    %13 = arith.addf %7, %12 : vector<16x64xf32>
    %14 = vector.extract_strided_slice %8 {offsets = [1, 0], sizes = [16, 64], strides = [1, 1]} : vector<18x64xf32> to vector<16x64xf32>
    %15 = vector.extract_strided_slice %6 {offsets = [3, 0], sizes = [1, 64], strides = [1, 1]} : vector<9x64xf32> to vector<1x64xf32>
    %16 = vector.broadcast %15 : vector<1x64xf32> to vector<16x64xf32>
    %17 = arith.mulf %14, %16 : vector<16x64xf32>
    %18 = arith.addf %13, %17 : vector<16x64xf32>
    %19 = vector.extract_strided_slice %8 {offsets = [2, 0], sizes = [16, 64], strides = [1, 1]} : vector<18x64xf32> to vector<16x64xf32>
    %20 = vector.extract_strided_slice %6 {offsets = [6, 0], sizes = [1, 64], strides = [1, 1]} : vector<9x64xf32> to vector<1x64xf32>
    %21 = vector.broadcast %20 : vector<1x64xf32> to vector<16x64xf32>
    %22 = arith.mulf %19, %21 : vector<16x64xf32>
    %23 = arith.addf %18, %22 : vector<16x64xf32>
    %24 = vector.extract_strided_slice %5 {offsets = [0, 4], sizes = [18, 64], strides = [1, 1]} : vector<18x72xf32> to vector<18x64xf32>
    %25 = vector.extract_strided_slice %24 {offsets = [0, 0], sizes = [16, 64], strides = [1, 1]} : vector<18x64xf32> to vector<16x64xf32>
    %26 = vector.extract_strided_slice %6 {offsets = [1, 0], sizes = [1, 64], strides = [1, 1]} : vector<9x64xf32> to vector<1x64xf32>
    %27 = vector.broadcast %26 : vector<1x64xf32> to vector<16x64xf32>
    %28 = arith.mulf %25, %27 : vector<16x64xf32>
    %29 = arith.addf %23, %28 : vector<16x64xf32>
    %30 = vector.extract_strided_slice %24 {offsets = [1, 0], sizes = [16, 64], strides = [1, 1]} : vector<18x64xf32> to vector<16x64xf32>
    %31 = vector.extract_strided_slice %6 {offsets = [4, 0], sizes = [1, 64], strides = [1, 1]} : vector<9x64xf32> to vector<1x64xf32>
    %32 = vector.broadcast %31 : vector<1x64xf32> to vector<16x64xf32>
    %33 = arith.mulf %30, %32 : vector<16x64xf32>
    %34 = arith.addf %29, %33 : vector<16x64xf32>
    %35 = vector.extract_strided_slice %24 {offsets = [2, 0], sizes = [16, 64], strides = [1, 1]} : vector<18x64xf32> to vector<16x64xf32>
    %36 = vector.extract_strided_slice %6 {offsets = [7, 0], sizes = [1, 64], strides = [1, 1]} : vector<9x64xf32> to vector<1x64xf32>
    %37 = vector.broadcast %36 : vector<1x64xf32> to vector<16x64xf32>
    %38 = arith.mulf %35, %37 : vector<16x64xf32>
    %39 = arith.addf %34, %38 : vector<16x64xf32>
    %40 = vector.extract_strided_slice %5 {offsets = [0, 8], sizes = [18, 64], strides = [1, 1]} : vector<18x72xf32> to vector<18x64xf32>
    %41 = vector.extract_strided_slice %40 {offsets = [0, 0], sizes = [16, 64], strides = [1, 1]} : vector<18x64xf32> to vector<16x64xf32>
    %42 = vector.extract_strided_slice %6 {offsets = [2, 0], sizes = [1, 64], strides = [1, 1]} : vector<9x64xf32> to vector<1x64xf32>
    %43 = vector.broadcast %42 : vector<1x64xf32> to vector<16x64xf32>
    %44 = arith.mulf %41, %43 : vector<16x64xf32>
    %45 = arith.addf %39, %44 : vector<16x64xf32>
    %46 = vector.extract_strided_slice %40 {offsets = [1, 0], sizes = [16, 64], strides = [1, 1]} : vector<18x64xf32> to vector<16x64xf32>
    %47 = vector.extract_strided_slice %6 {offsets = [5, 0], sizes = [1, 64], strides = [1, 1]} : vector<9x64xf32> to vector<1x64xf32>
    %48 = vector.broadcast %47 : vector<1x64xf32> to vector<16x64xf32>
    %49 = arith.mulf %46, %48 : vector<16x64xf32>
    %50 = arith.addf %45, %49 : vector<16x64xf32>
    %51 = vector.extract_strided_slice %40 {offsets = [2, 0], sizes = [16, 64], strides = [1, 1]} : vector<18x64xf32> to vector<16x64xf32>
    %52 = vector.extract_strided_slice %6 {offsets = [8, 0], sizes = [1, 64], strides = [1, 1]} : vector<9x64xf32> to vector<1x64xf32>
    %53 = vector.broadcast %52 : vector<1x64xf32> to vector<16x64xf32>
    %54 = arith.mulf %51, %53 : vector<16x64xf32>
    %55 = arith.addf %50, %54 : vector<16x64xf32>
    %c0_9 = arith.constant 0 : index
    %c0_10 = arith.constant 0 : index
    %56 = vector.load %arg3[%c0_9, %c0_10] : memref<1x64xf32, #tpu.memory_space<vmem>>, vector<1x64xf32>
    %57 = vector.broadcast %56 : vector<1x64xf32> to vector<16x64xf32>
    %58 = arith.addf %55, %57 : vector<16x64xf32>
    %cst_11 = arith.constant 0.000000e+00 : f32
    %59 = vector.broadcast %cst_11 : f32 to vector<16x64xf32>
    %60 = arith.maximumf %58, %59 : vector<16x64xf32>
    %61 = arith.truncf %60 : vector<16x64xf32> to vector<16x64xbf16>
    %c0_12 = arith.constant 0 : index
    %c0_13 = arith.constant 0 : index
    %62 = vector.load %arg4[%c0_12, %c0_13] : memref<64x128xbf16, #tpu.memory_space<vmem>>, vector<64x128xbf16>
    %cst_14 = arith.constant dense<0.000000e+00> : vector<16x128xf32>
    %63 = tpu.matmul %61, %62, %cst_14 {dimension_numbers = #tpu.dot_dimension_numbers<[1], [0], [0], [1], [0, 0, 1, 1], [], []>} : vector<16x64xbf16>, vector<64x128xbf16>, vector<16x128xf32> -> vector<16x128xf32>
    %c0_15 = arith.constant 0 : index
    %c0_16 = arith.constant 0 : index
    %64 = vector.load %arg5[%c0_15, %c0_16] : memref<1x128xf32, #tpu.memory_space<vmem>>, vector<1x128xf32>
    %65 = vector.broadcast %64 : vector<1x128xf32> to vector<16x128xf32>
    %66 = arith.addf %63, %65 : vector<16x128xf32>
    %cst_17 = arith.constant 0.000000e+00 : f32
    %67 = vector.broadcast %cst_17 : f32 to vector<16x128xf32>
    %68 = arith.maximumf %66, %67 : vector<16x128xf32>
    %c0_18 = arith.constant 0 : index
    %c0_19 = arith.constant 0 : index
    %c0_20 = arith.constant 0 : index
    %69 = vector.load %arg6[%c0_18, %c0_19, %c0_20] : memref<1x16x128xf32, #tpu.memory_space<vmem>>, vector<1x16x128xf32>
    %70 = vector.shape_cast %69 : vector<1x16x128xf32> to vector<16x128xf32>
    %71 = vector.shape_cast %68 : vector<16x128xf32> to vector<1x16x128xf32>
    tpu.vector_store %arg6[%c0_18, %c0_19, %c0_20], %71 {strides = array<i32>} : memref<1x16x128xf32, #tpu.memory_space<vmem>>, vector<1x16x128xf32>,
    return
  }
  func.func @transform_0(%arg0: i32) -> (i32, i32, i32) {
    %c0_i32 = arith.constant 0 : i32
    %c0_i32_0 = arith.constant 0 : i32
    %c0_i32_1 = arith.constant 0 : i32
    return %arg0, %c0_i32, %c0_i32_0 : i32, i32, i32
  }
  func.func @transform_1(%arg0: i32) -> (i32, i32) {
    %c0_i32 = arith.constant 0 : i32
    %c0_i32_0 = arith.constant 0 : i32
    %c0_i32_1 = arith.constant 0 : i32
    return %c0_i32, %c0_i32_0 : i32, i32
  }
  func.func @transform_2(%arg0: i32) -> (i32, i32) {
    %c0_i32 = arith.constant 0 : i32
    %c0_i32_0 = arith.constant 0 : i32
    %c0_i32_1 = arith.constant 0 : i32
    return %c0_i32, %c0_i32_0 : i32, i32
  }
  func.func @transform_3(%arg0: i32) -> (i32, i32) {
    %c0_i32 = arith.constant 0 : i32
    %c0_i32_0 = arith.constant 0 : i32
    %c0_i32_1 = arith.constant 0 : i32
    return %c0_i32, %c0_i32_0 : i32, i32
  }
  func.func @transform_4(%arg0: i32) -> (i32, i32) {
    %c0_i32 = arith.constant 0 : i32
    %c0_i32_0 = arith.constant 0 : i32
    %c0_i32_1 = arith.constant 0 : i32
    return %c0_i32, %c0_i32_0 : i32, i32
  }
  func.func @transform_5(%arg0: i32) -> (i32, i32, i32) {
    %c0_i32 = arith.constant 0 : i32
    %c0_i32_0 = arith.constant 0 : i32
    %c0_i32_1 = arith.constant 0 : i32
    return %arg0, %c0_i32, %c0_i32_0 : i32, i32, i32
  }
}

</mosaic_0001>

<llo_original>
// kernel: tpu_custom_call.1
$region0: #{tpu_custom_call.1}
  #allocation0 [shape = 'u32[]', space=smem, size = 0x4, offset = 0x4, fixed_abs, tag = 'smem constant byte address 0x4 - core index']
  #allocation1 [shape = 'u32[144,128]{1,0:T(1,128)}', space=vmem, size = 0x12000, scoped, tag = 'internal scratch']
  #allocation2 [shape = 'f32[18,72]{1,0:T(8,128)}', space=vmem, size = 0x3000, scoped, tag = 'scratch operand']
  %s0 = inlined_call_operand.hbm [shape: f32[2,16,64], index: 0, kind: input, shape index: {}]
  %s1 = inlined_call_operand.hbm [shape: f32[9,64], index: 1, kind: input, shape index: {}]
  %s2 = inlined_call_operand.vmem [shape: f32[1,64], index: 2, kind: input, shape index: {}]
  %s3 = inlined_call_operand.hbm [shape: bf16[64,128], index: 3, kind: input, shape index: {}]
  %s4 = inlined_call_operand.vmem [shape: f32[1,128], index: 4, kind: input, shape index: {}]
  %s5 = inlined_call_operand.hbm [shape: f32[2,16,128], index: 5, kind: output, shape index: {}]
  %s6 = sld [smem:[#allocation0]]
  $region65: #{tpu_custom_call.1} parent=0
    _
  %s8 = ssub.s32 1, %s6
  %s9 = scalar_select 0, %s8, %s6
  $region1: #{tpu_custom_call.1} parent=0
    #allocation3 [shape = 'u8[16384]{0}', space=vmem, size = 0x4000, scoped, tag = 'input window, operand 0']
    #allocation4 [shape = 's32[2]{0}', space=sflag, size = 0x8, scoped, tag = 'scoped memory for tpu_custom_call.1']
    #allocation5 [shape = 's32[2]{0}', space=sflag, size = 0x8, scoped, tag = 'scoped memory for tpu_custom_call.1']
    #allocation6 [shape = 'u8[8192]{0}', space=vmem, size = 0x2000, scoped, tag = 'input window, operand 1, single buffered']
    #allocation7 [shape = 's32[1]{0}', space=sflag, size = 0x4, scoped, tag = 'scoped memory for tpu_custom_call.1']
    #allocation8 [shape = 'u8[16384]{0}', space=vmem, size = 0x4000, scoped, tag = 'input window, operand 3, single buffered']
    #allocation9 [shape = 'u8[16384]{0}', space=vmem, size = 0x4000, scoped, tag = 'output window, operand 0']
    %10 = vsyncpa [#allocation4], 0
    %s11 = scalar_lea.sflag [#allocation4], 1
    %12 = vsyncpa %s11, 0
    %13 = vsyncpa [#allocation7], 0
    %14 = vsyncpa [#allocation5], 0
    %s15 = scalar_lea.sflag [#allocation5], 1
    %16 = vsyncpa %s15, 0
    loop: start=0, step=1, limit=4
    $region2: #{tpu_custom_call.1} parent=1 // loop_pre_header
      _
    $region3: #{tpu_custom_call.1} parent=1 // loop_header
      %s18 = sphi 0, %s22
      %p19 = scmp.ge.s32.totalorder %s18, 4
      %s28 = sphi 0, %s30
      %s31 = sphi 0, %s28
      %s32 = sphi 0, %s31
      %s48 = sphi 0, %s32
      %s52 = sphi 0, %s52
      %s54 = sphi 0, %s52
      %s55 = sphi 0, %s54
      %s69 = sphi 0, %s55
      %s73 = sphi 0, %s73
      %s75 = sphi 0, %s73
      %s76 = sphi 0, %s75
      %s90 = sphi 0, %s76
      %s94 = sphi 0, %s94
      %s96 = sphi 0, %s94
      %s97 = sphi 0, %s96
      %s111 = sphi 0, %s97
      %s115 = sphi 0, %s115
      %s117 = sphi 0, %s115
      %s118 = sphi 0, %s117
      %s132 = sphi 0, %s118
      %s138 = sphi 0, %s140
      %s141 = sphi 0, %s138
      %s142 = sphi 0, %s141
      %s158 = sphi 0, %s142
    $region4: #{tpu_custom_call.1} parent=1 // loop_header_branch
      %21 = sbr.rel (%p19) target = $region8
    $region5: #{tpu_custom_call.1} parent=1 // loop_body
      %s23 = ssub.s32 %s18, 1
      %s24 = ssub.s32 %s18, 2
      %s25 = sadd.s32 %s18, 1
      %s26 = ssub.s32 %s18, %s25
      %p27 = scmp.eq.s32.totalorder %s26, 0
      %s29 = sadd.s32 %s28, 1
      %s30 = scalar_select %p27, %s28, %s29
      %p33 = pneg %p27
      %p34 = scmp.eq.s32.totalorder %s18, 1
      %p35 = por %p33, %p34
      %p36 = scmp.ne.s32.totalorder %s28, %s31
      %p37 = scmp.eq.s32.totalorder %s18, 0
      %p38 = por %p36, %p37
      %p39 = scmp.ne.s32.totalorder %s28, %s31
      %p40 = scmp.eq.s32.totalorder %s23, 1
      %p41 = por %p39, %p40
      %p42 = scmp.ne.s32.totalorder %s31, %s32
      %p43 = scmp.eq.s32.totalorder %s23, 0
      %p44 = por %p42, %p43
      %p45 = scmp.ne.s32.totalorder %s31, %s32
      %p46 = scmp.eq.s32.totalorder %s24, 1
      %p47 = por %p45, %p46
      %p49 = scmp.ne.s32.totalorder %s32, %s48
      %p50 = scmp.eq.s32.totalorder %s24, 0
      %p51 = por %p49, %p50
      %s53 = sadd.s32 %s52, 1
      %p56 = scmp.eq.s32.totalorder %s18, 1
      %p57 = scmp.ne.s32.totalorder %s52, %s54
      %p58 = scmp.eq.s32.totalorder %s18, 0
      %p59 = por %p57, %p58
      %p60 = scmp.ne.s32.totalorder %s52, %s54
      %p61 = scmp.eq.s32.totalorder %s23, 1
      %p62 = por %p60, %p61
      %p63 = scmp.ne.s32.totalorder %s54, %s55
      %p64 = scmp.eq.s32.totalorder %s23, 0
      %p65 = por %p63, %p64
      %p66 = scmp.ne.s32.totalorder %s54, %s55
      %p67 = scmp.eq.s32.totalorder %s24, 1
      %p68 = por %p66, %p67
      %p70 = scmp.ne.s32.totalorder %s55, %s69
      %p71 = scmp.eq.s32.totalorder %s24, 0
      %p72 = por %p70, %p71
      %s74 = sadd.s32 %s73, 1
      %p77 = scmp.eq.s32.totalorder %s18, 1
      %p78 = scmp.ne.s32.totalorder %s73, %s75
      %p79 = scmp.eq.s32.totalorder %s18, 0
      %p80 = por %p78, %p79
      %p81 = scmp.ne.s32.totalorder %s73, %s75
      %p82 = scmp.eq.s32.totalorder %s23, 1
      %p83 = por %p81, %p82
      %p84 = scmp.ne.s32.totalorder %s75, %s76
      %p85 = scmp.eq.s32.totalorder %s23, 0
      %p86 = por %p84, %p85
      %p87 = scmp.ne.s32.totalorder %s75, %s76
      %p88 = scmp.eq.s32.totalorder %s24, 1
      %p89 = por %p87, %p88
      %p91 = scmp.ne.s32.totalorder %s76, %s90
      %p92 = scmp.eq.s32.totalorder %s24, 0
      %p93 = por %p91, %p92
      %s95 = sadd.s32 %s94, 1
      %p98 = scmp.eq.s32.totalorder %s18, 1
      %p99 = scmp.ne.s32.totalorder %s94, %s96
      %p100 = scmp.eq.s32.totalorder %s18, 0
      %p101 = por %p99, %p100
      %p102 = scmp.ne.s32.totalorder %s94, %s96
      %p103 = scmp.eq.s32.totalorder %s23, 1
      %p104 = por %p102, %p103
      %p105 = scmp.ne.s32.totalorder %s96, %s97
      %p106 = scmp.eq.s32.totalorder %s23, 0
      %p107 = por %p105, %p106
      %p108 = scmp.ne.s32.totalorder %s96, %s97
      %p109 = scmp.eq.s32.totalorder %s24, 1
      %p110 = por %p108, %p109
      %p112 = scmp.ne.s32.totalorder %s97, %s111
      %p113 = scmp.eq.s32.totalorder %s24, 0
      %p114 = por %p112, %p113
      %s116 = sadd.s32 %s115, 1
      %p119 = scmp.eq.s32.totalorder %s18, 1
      %p120 = scmp.ne.s32.totalorder %s115, %s117
      %p121 = scmp.eq.s32.totalorder %s18, 0
      %p122 = por %p120, %p121
      %p123 = scmp.ne.s32.totalorder %s115, %s117
      %p124 = scmp.eq.s32.totalorder %s23, 1
      %p125 = por %p123, %p124
      %p126 = scmp.ne.s32.totalorder %s117, %s118
      %p127 = scmp.eq.s32.totalorder %s23, 0
      %p128 = por %p126, %p127
      %p129 = scmp.ne.s32.totalorder %s117, %s118
      %p130 = scmp.eq.s32.totalorder %s24, 1
      %p131 = por %p129, %p130
      %p133 = scmp.ne.s32.totalorder %s118, %s132
      %p134 = scmp.eq.s32.totalorder %s24, 0
      %p135 = por %p133, %p134
      %s136 = ssub.s32 %s18, %s25
      %p137 = scmp.eq.s32.totalorder %s136, 0
      %s139 = sadd.s32 %s138, 1
      %s140 = scalar_select %p137, %s138, %s139
      %p143 = pneg %p137
      %p144 = scmp.eq.s32.totalorder %s18, 1
      %p145 = por %p143, %p144
      %p146 = scmp.ne.s32.totalorder %s138, %s141
      %p147 = scmp.eq.s32.totalorder %s18, 0
      %p148 = por %p146, %p147
      %p149 = scmp.ne.s32.totalorder %s138, %s141
      %p150 = scmp.eq.s32.totalorder %s23, 1
      %p151 = por %p149, %p150
      %p152 = scmp.ne.s32.totalorder %s141, %s142
      %p153 = scmp.eq.s32.totalorder %s23, 0
      %p154 = por %p152, %p153
      %p155 = scmp.ne.s32.totalorder %s141, %s142
      %p156 = scmp.eq.s32.totalorder %s24, 1
      %p157 = por %p155, %p156
      %p159 = scmp.ne.s32.totalorder %s142, %s158
      %p160 = scmp.eq.s32.totalorder %s24, 0
      %p161 = por %p159, %p160
      %p162 = scmp.le.s32.totalorder 1, %s18
      %p163 = scmp.lt.s32.totalorder %s18, 3
      %p164 = pnand %p162, %p163
      %p165 = pneg %p164
      // Predicated region
      $region9: #{tpu_custom_call.1} parent=5 // pred_check
        _
      $region10: #{tpu_custom_call.1} parent=5 // pred_check_branch
        %167 = sbr.rel (%p164) target = $region12
      $region11: #{tpu_custom_call.1} parent=5 // pred_region
        %s168 = ssub.s32 %s18, 1
        // Predicated region
        $region13: #{tpu_custom_call.1} parent=11 // pred_check
          %p169 = pneg %p65
        $region14: #{tpu_custom_call.1} parent=11 // pred_check_branch
          %171 = sbr.rel (%p169) target = $region16
        $region15: #{tpu_custom_call.1} parent=11 // pred_region
          %s173 = ssub.s32 256, 256
          %174 = vsyncadd [#allocation7], %s173
          %s175 = sshll.u32 [#allocation6], 4
          %s176 = int_to_ptr.vmem [resolvable:$true] %s175
          %181 = dma.hbm_to_vmem [thread:$0]  %s1, 256, %s176, [#allocation7], 128, 128, 8
        $region16: #{tpu_custom_call.1} parent=11 // pred_fallthru
          _
        // Predicated region
        $region17: #{tpu_custom_call.1} parent=11 // pred_check
          %p182 = pneg %p86
        $region18: #{tpu_custom_call.1} parent=11 // pred_check_branch
          %184 = sbr.rel (%p182) target = $region20
        $region19: #{tpu_custom_call.1} parent=11 // pred_region
          _
        $region20: #{tpu_custom_call.1} parent=11 // pred_fallthru
          _
        // Predicated region
        $region21: #{tpu_custom_call.1} parent=11 // pred_check
          %p185 = pneg %p107
        $region22: #{tpu_custom_call.1} parent=11 // pred_check_branch
          %187 = sbr.rel (%p185) target = $region24
        $region23: #{tpu_custom_call.1} parent=11 // pred_region
          %s189 = ssub.s32 512, 512
          %190 = vsyncadd [#allocation7], %s189
          %s191 = sshll.u32 [#allocation8], 4
          %s192 = int_to_ptr.vmem [resolvable:$true] %s191
          %197 = dma.hbm_to_vmem [thread:$0]  %s3, 512, %s192, [#allocation7], 64, 64, 4
        $region24: #{tpu_custom_call.1} parent=11 // pred_fallthru
          _
        // Predicated region
        $region25: #{tpu_custom_call.1} parent=11 // pred_check
          %p198 = pneg %p128
        $region26: #{tpu_custom_call.1} parent=11 // pred_check_branch
          %200 = sbr.rel (%p198) target = $region28
        $region27: #{tpu_custom_call.1} parent=11 // pred_region
          _
        $region28: #{tpu_custom_call.1} parent=11 // pred_fallthru
          _
      $region12: #{tpu_custom_call.1} parent=5 // pred_fallthru
        _
      %p201 = scmp.lt.s32.totalorder %s18, 2
      // Predicated region
      $region29: #{tpu_custom_call.1} parent=5 // pred_check
        %p202 = pneg %p201
      $region30: #{tpu_custom_call.1} parent=5 // pred_check_branch
        %204 = sbr.rel (%p202) target = $region32
      $region31: #{tpu_custom_call.1} parent=5 // pred_region
        // Predicated region
        $region33: #{tpu_custom_call.1} parent=31 // pred_check
          %p205 = pneg %p38
        $region34: #{tpu_custom_call.1} parent=31 // pred_check_branch
          %207 = sbr.rel (%p205) target = $region36
        $region35: #{tpu_custom_call.1} parent=31 // pred_region
          %s208 = sand.u32 %s28, 1
          %s209 = scalar_lea.sflag [#allocation4], %s208
          %s210 = sand.u32 %s28, 1
          %s211 = smul.addr %s210, 16
          %s212 = scalar_lea.vmem [#allocation3], %s211
          %s214 = ssub.s32 256, 256
          %215 = vsyncadd %s209, %s214
          %s216 = smul.addr %s18, 2
          %s217 = smul.addr %s216, 128
          %s218 = scalar_lea.hbm %s0, %s217
          %s219 = sshll.u32 %s212, 4
          %s220 = int_to_ptr.vmem [resolvable:$true] %s219
          %225 = dma.hbm_to_vmem [thread:$0]  %s218, 256, %s220, %s209, 128, 128, 8
        $region36: #{tpu_custom_call.1} parent=31 // pred_fallthru
          _
      $region32: #{tpu_custom_call.1} parent=5 // pred_fallthru
        _
      %p226 = scmp.le.s32.totalorder 1, %s18
      %p227 = scmp.lt.s32.totalorder %s18, 3
      %p228 = pnand %p226, %p227
      %p229 = pneg %p228
      // Predicated region
      $region37: #{tpu_custom_call.1} parent=5 // pred_check
        _
      $region38: #{tpu_custom_call.1} parent=5 // pred_check_branch
        %231 = sbr.rel (%p228) target = $region40
      $region39: #{tpu_custom_call.1} parent=5 // pred_region
        %s232 = ssub.s32 %s18, 1
        %s233 = sand.u32 %s31, 1
        %s234 = scalar_lea.sflag [#allocation4], %s233
        %s235 = sand.u32 %s31, 1
        %s236 = smul.addr %s235, 16
        %s237 = scalar_lea.vmem [#allocation3], %s236
        // Predicated region
        $region41: #{tpu_custom_call.1} parent=39 // pred_check
          %p238 = pneg %p44
        $region42: #{tpu_custom_call.1} parent=39 // pred_check_branch
          %240 = sbr.rel (%p238) target = $region44
        $region43: #{tpu_custom_call.1} parent=39 // pred_region
          %241 = dma.done %s234, 256
        $region44: #{tpu_custom_call.1} parent=39 // pred_fallthru
          _
        // Predicated region
        $region45: #{tpu_custom_call.1} parent=39 // pred_check
          %p242 = pneg %p65
        $region46: #{tpu_custom_call.1} parent=39 // pred_check_branch
          %244 = sbr.rel (%p242) target = $region48
        $region47: #{tpu_custom_call.1} parent=39 // pred_region
          %245 = dma.done [#allocation7], 256
        $region48: #{tpu_custom_call.1} parent=39 // pred_fallthru
          _
        // Predicated region
        $region49: #{tpu_custom_call.1} parent=39 // pred_check
          %p246 = pneg %p107
        $region50: #{tpu_custom_call.1} parent=39 // pred_check_branch
          %248 = sbr.rel (%p246) target = $region52
        $region51: #{tpu_custom_call.1} parent=39 // pred_region
          %249 = dma.done [#allocation7], 512
        $region52: #{tpu_custom_call.1} parent=39 // pred_fallthru
          _
        %s250 = sand.u32 %s31, 1
        %s251 = scalar_lea.sflag [#allocation4], %s250
        %s252 = sand.u32 %s31, 1
        %s253 = smul.addr %s252, 16
        %s254 = scalar_lea.vmem [#allocation3], %s253
        %p255 = pneg %p44
        %p256 = pneg %p41
        %p257 = pneg %p65
        %p258 = pneg %p62
        %p259 = pneg %p86
        %p260 = pneg %p83
        %p261 = pneg %p107
        %p262 = pneg %p104
        %p263 = pneg %p128
        %p264 = pneg %p125
        %p265 = pneg %p154
        %p266 = pneg %p151
        %s267 = sand.u32 %s141, 1
        %s268 = scalar_lea.sflag [#allocation5], %s267
        %s269 = sand.u32 %s141, 1
        %s270 = smul.addr %s269, 16
        %s271 = scalar_lea.vmem [#allocation9], %s270
        %vm273 = vcmask 588800
        %274 = vst.msk [vmem:[#allocation2] sm:$0xff] %vm273, 0.0
        %275 = vst.msk [vmem:[#allocation2 + $0x8] sm:$0xff] %vm273, 0.0
        %vm276 = vcmask 582656
        %277 = vst.msk [vmem:[#allocation2 + $0x10] sm:$0x3] %vm276, 0.0
        %v278 = vld [vmem:[%s237] sm:$0xff]
        %v279 = vld [vmem:[%s237 + $0x8] sm:$0xff]
        %282 = vrot.lane.b32.xlu0 %v278, 4
        %v283 = vpop.permute.xlu0 %282
        %284 = vrot.lane.b32.xlu0 %v279, 4
        %v285 = vpop.permute.xlu0 %284
        %vm288 = vcmask 556064
        %289 = vst.msk [vmem:[#allocation2 + $0x1] sm:$0xff] %vm288, %v283
        %290 = vst.msk [vmem:[#allocation2 + $0x9] sm:$0xff] %vm288, %v285
        %v291 = vld [vmem:[#allocation2] sm:$0xff]
        %v292 = vld [vmem:[#allocation2 + $0x8] sm:$0xff]
        %v293 = vld [vmem:[#allocation2 + $0x10] sm:$0x3]
        %v294 = vld [vmem:[#allocation6] sm:$0xff]
        %v295 = vld [vmem:[#allocation6 + $0x8] sm:$0x1]
        %v296 = vlaneseq
        %v297 = vshrl.u32 %v296, 7
        %v298 = vsub.s32 0, %v297
        %v299 = vrot.slane %v294, %v298
        %v300 = vmul.f32 %v291, %v299
        %v301 = vmul.f32 %v292, %v299
        %v302 = vadd.f32 %v300, 0.0
        %v303 = vadd.f32 %v301, 0.0
        %v304 = vlaneseq
        %v305 = vshrl.u32 %v304, 7
        %v306 = vsub.s32 3, %v305
        %v307 = vrot.slane %v294, %v306
        %v308 = vmul.f32 %v291, %v307
        %v309 = vmul.f32 %v292, %v307
        %v310 = vmul.f32 %v293, %v307
        %vm314 = vcmask 1046528
        %v315 = vrot.slane %v308, 1
        %v316 = vrot.slane %v309, 1
        %v317 = vsel %vm314, %v315, %v316
        %v318 = vrot.slane %v310, 1
        %v319 = vsel %vm314, %v316, %v318
        %v322 = vadd.f32 %v302, %v317
        %v323 = vadd.f32 %v303, %v319
        %v324 = vlaneseq
        %v325 = vshrl.u32 %v324, 7
        %v326 = vsub.s32 6, %v325
        %v327 = vrot.slane %v294, %v326
        %v328 = vmul.f32 %v291, %v327
        %v329 = vmul.f32 %v292, %v327
        %v330 = vmul.f32 %v293, %v327
        %vm334 = vcmask 1045504
        %v335 = vrot.slane %v328, 2
        %v336 = vrot.slane %v329, 2
        %v337 = vsel %vm334, %v335, %v336
        %v338 = vrot.slane %v330, 2
        %v339 = vsel %vm334, %v336, %v338
        %v342 = vadd.f32 %v322, %v337
        %v343 = vadd.f32 %v323, %v339
        %v344 = vlaneseq
        %v345 = vshrl.u32 %v344, 7
        %v346 = vsub.s32 1, %v345
        %v347 = vrot.slane %v294, %v346
        %349 = vrot.lane.b32.xlu0 %v347, 4
        %v350 = vpop.permute.xlu0 %349
        %v352 = vmul.f32 %v291, %v350
        %v353 = vmul.f32 %v292, %v350
        %356 = vrot.lane.b32.xlu0 %v352, 124
        %v357 = vpop.permute.xlu0 %356
        %358 = vrot.lane.b32.xlu0 %v353, 124
        %v359 = vpop.permute.xlu0 %358
        %v362 = vadd.f32 %v342, %v357
        %v363 = vadd.f32 %v343, %v359
        %v364 = vlaneseq
        %v365 = vshrl.u32 %v364, 7
        %v366 = vsub.s32 4, %v365
        %v367 = vrot.slane %v294, %v366
        %369 = vrot.lane.b32.xlu0 %v367, 4
        %v370 = vpop.permute.xlu0 %369
        %v372 = vmul.f32 %v291, %v370
        %v373 = vmul.f32 %v292, %v370
        %v374 = vmul.f32 %v293, %v370
        %v378 = vrot.slane %v372, 1
        %v379 = vrot.slane %v373, 1
        %v380 = vsel %vm314, %v378, %v379
        %v381 = vrot.slane %v374, 1
        %v382 = vsel %vm314, %v379, %v381
        %383 = vrot.lane.b32.xlu0 %v380, 124
        %v384 = vpop.permute.xlu0 %383
        %385 = vrot.lane.b32.xlu0 %v382, 124
        %v386 = vpop.permute.xlu0 %385
        %v389 = vadd.f32 %v362, %v384
        %v390 = vadd.f32 %v363, %v386
        %v391 = vlaneseq
        %v392 = vshrl.u32 %v391, 7
        %v393 = vsub.s32 7, %v392
        %v394 = vrot.slane %v294, %v393
        %396 = vrot.lane.b32.xlu0 %v394, 4
        %v397 = vpop.permute.xlu0 %396
        %v399 = vmul.f32 %v291, %v397
        %v400 = vmul.f32 %v292, %v397
        %v401 = vmul.f32 %v293, %v397
        %v405 = vrot.slane %v399, 2
        %v406 = vrot.slane %v400, 2
        %v407 = vsel %vm334, %v405, %v406
        %v408 = vrot.slane %v401, 2
        %v409 = vsel %vm334, %v406, %v408
        %410 = vrot.lane.b32.xlu0 %v407, 124
        %v411 = vpop.permute.xlu0 %410
        %412 = vrot.lane.b32.xlu0 %v409, 124
        %v413 = vpop.permute.xlu0 %412
        %v416 = vadd.f32 %v389, %v411
        %v417 = vadd.f32 %v390, %v413
        %v418 = vlaneseq
        %v419 = vshrl.u32 %v418, 7
        %v420 = vsub.s32 2, %v419
        %v421 = vrot.slane %v294, %v420
        %423 = vrot.lane.b32.xlu0 %v421, 8
        %v424 = vpop.permute.xlu0 %423
        %v426 = vmul.f32 %v291, %v424
        %v427 = vmul.f32 %v292, %v424
        %430 = vrot.lane.b32.xlu0 %v426, 120
        %v431 = vpop.permute.xlu0 %430
        %432 = vrot.lane.b32.xlu0 %v427, 120
        %v433 = vpop.permute.xlu0 %432
        %v436 = vadd.f32 %v416, %v431
        %v437 = vadd.f32 %v417, %v433
        %v438 = vlaneseq
        %v439 = vshrl.u32 %v438, 7
        %v440 = vsub.s32 5, %v439
        %v441 = vrot.slane %v294, %v440
        %443 = vrot.lane.b32.xlu0 %v441, 8
        %v444 = vpop.permute.xlu0 %443
        %v446 = vmul.f32 %v291, %v444
        %v447 = vmul.f32 %v292, %v444
        %v448 = vmul.f32 %v293, %v444
        %v452 = vrot.slane %v446, 1
        %v453 = vrot.slane %v447, 1
        %v454 = vsel %vm314, %v452, %v453
        %v455 = vrot.slane %v448, 1
        %v456 = vsel %vm314, %v453, %v455
        %457 = vrot.lane.b32.xlu0 %v454, 120
        %v458 = vpop.permute.xlu0 %457
        %459 = vrot.lane.b32.xlu0 %v456, 120
        %v460 = vpop.permute.xlu0 %459
        %v463 = vadd.f32 %v436, %v458
        %v464 = vadd.f32 %v437, %v460
        %v465 = vlaneseq
        %v466 = vshrl.u32 %v465, 7
        %v467 = vsub.s32 0, %v466
        %v468 = vrot.slane %v295, %v467
        %470 = vrot.lane.b32.xlu0 %v468, 8
        %v471 = vpop.permute.xlu0 %470
        %v473 = vmul.f32 %v291, %v471
        %v474 = vmul.f32 %v292, %v471
        %v475 = vmul.f32 %v293, %v471
        %v479 = vrot.slane %v473, 2
        %v480 = vrot.slane %v474, 2
        %v481 = vsel %vm334, %v479, %v480
        %v482 = vrot.slane %v475, 2
        %v483 = vsel %vm334, %v480, %v482
        %484 = vrot.lane.b32.xlu0 %v481, 120
        %v485 = vpop.permute.xlu0 %484
        %486 = vrot.lane.b32.xlu0 %v483, 120
        %v487 = vpop.permute.xlu0 %486
        %v490 = vadd.f32 %v463, %v485
        %v491 = vadd.f32 %v464, %v487
        %v492 = vld [vmem:[%s2] sm:$0x1]
        %v494 = vlaneseq
        %v495 = vshrl.u32 %v494, 7
        %v496 = vsub.s32 0, %v495
        %v497 = vrot.slane %v492, %v496
        %v499 = vadd.f32 %v490, %v497
        %v500 = vadd.f32 %v491, %v497
        %v501 = vmax.f32 %v499, 0.0
        %v502 = vmax.f32 %v500, 0.0
        %v503 = vpack.c.bf16 %v502, %v501
        %v504 = vld [vmem:[#allocation8] sm:$0xf]
        %v505 = vld [vmem:[#allocation8 + $0x4] sm:$0xf]
        %v506 = vld [vmem:[#allocation8 + $0x8] sm:$0xf]
        %v507 = vld [vmem:[#allocation8 + $0xc] sm:$0xf]
        %v508 = vld [vmem:[#allocation8 + $0x10] sm:$0xf]
        %v509 = vld [vmem:[#allocation8 + $0x14] sm:$0xf]
        %v510 = vld [vmem:[#allocation8 + $0x18] sm:$0xf]
        %v511 = vld [vmem:[#allocation8 + $0x1c] sm:$0xf]
        %v512 = vld [vmem:[%s4] sm:$0x1]
        %v514 = vlaneseq
        %v515 = vshrl.u32 %v514, 7
        %v516 = vsub.s32 0, %v515
        %v517 = vrot.slane %v512, %v516
        %v527 = vunpack.c.l.b16 %v504
        %v528 = vunpack.c.l.b16 %v505
        %v529 = vunpack.c.l.b16 %v506
        %v530 = vunpack.c.l.b16 %v507
        %v531 = vunpack.c.l.b16 %v508
        %v532 = vunpack.c.l.b16 %v509
        %v533 = vunpack.c.l.b16 %v510
        %v534 = vunpack.c.l.b16 %v511
        %v535 = vpack.c.b16 %v528, %v527
        %v536 = vpack.c.b16 %v530, %v529
        %v537 = vpack.c.b16 %v532, %v531
        %v538 = vpack.c.b16 %v534, %v533
        %vm543 = vcmask 523264
        %v545 = vsel %vm543, %v503, 0
        %547 = vmatprep.subr.bf16.mxu0 0
        %548 = vmatpush1.bf16.msra.mxu0 %v535
        %549 = vmatprep.subr.bf16.mxu0 0
        %550 = vmatpush1.bf16.msra.mxu0 %v536
        %551 = vmatprep.subr.bf16.mxu0 0
        %552 = vmatpush1.bf16.msra.mxu0 %v537
        %553 = vmatprep.subr.bf16.mxu0 0
        %554 = vmatpush1.bf16.msra.mxu0 %v538
        %555 = vmatprep.subr.bf16.mxu0 0
        %556 = vmatpush1.bf16.msra.mxu0 0
        %557 = vmatprep.subr.bf16.mxu0 0
        %558 = vmatpush1.bf16.msra.mxu0 0
        %559 = vmatprep.subr.bf16.mxu0 0
        %560 = vmatpush1.bf16.msra.mxu0 0
        %561 = vmatprep.subr.bf16.mxu0 0
        %562 = vmatpush1.bf16.msra.mxu0 0
        %563 = vmatprep.subr.bf16.mxu0 0
        %564 = vmatpush1.bf16.msra.mxu0 0
        %565 = vmatprep.subr.bf16.mxu0 0
        %566 = vmatpush1.bf16.msra.mxu0 0
        %567 = vmatprep.subr.bf16.mxu0 0
        %568 = vmatpush1.bf16.msra.mxu0 0
        %569 = vmatprep.subr.bf16.mxu0 0
        %570 = vmatpush1.bf16.msra.mxu0 0
        %571 = vmatprep.subr.bf16.mxu0 0
        %572 = vmatpush1.bf16.msra.mxu0 0
        %573 = vmatprep.subr.bf16.mxu0 0
        %574 = vmatpush1.bf16.msra.mxu0 0
        %575 = vmatprep.subr.bf16.mxu0 0
        %576 = vmatpush1.bf16.msra.mxu0 0
        %577 = vmatprep.subr.bf16.mxu0 0
        %578 = vmatpush1.bf16.msra.mxu0 0
        %579 = vmatprep.mubr.bf16.mxu0 0
        %580 = vmatmul.mubr.bf16.gmra.mrb[0].mxu0 %v545
        %v581 = vpop.f32.mrb[0].mxu0
        %v582 = vadd.f32 %v517, %v581
        %v583 = vpop.f32.mrb[0].mxu0
        %v584 = vpop.f32.mrb[0].mxu0
        %v585 = vadd.f32 %v517, %v584
        %v586 = vpop.f32.mrb[0].mxu0
        %587 = vdwg.mxu0
        %v588 = vmax.f32 %v582, 0.0
        %v589 = vmax.f32 %v585, 0.0
        %590 = vst [vmem:[%s271] sm:$0xff] %v588
        %591 = vst [vmem:[%s271 + $0x8] sm:$0xff] %v589
        %s592 = sand.u32 %s141, 1
        %s593 = scalar_lea.sflag [#allocation5], %s592
        %s594 = sand.u32 %s141, 1
        %s595 = smul.addr %s594, 16
        %s596 = scalar_lea.vmem [#allocation9], %s595
        // Predicated region
        $region53: #{tpu_custom_call.1} parent=39 // pred_check
          %p597 = pneg %p151
        $region54: #{tpu_custom_call.1} parent=39 // pred_check_branch
          %599 = sbr.rel (%p597) target = $region56
        $region55: #{tpu_custom_call.1} parent=39 // pred_region
          %s601 = ssub.s32 256, 256
          %602 = vsyncadd %s593, %s601
          %s603 = smul.addr %s23, 2
          %s604 = smul.addr %s603, 128
          %s605 = scalar_lea.hbm %s5, %s604
          %s606 = sshll.u32 %s596, 4
          %s607 = int_to_ptr.vmem [resolvable:$true] %s606
          %612 = dma.vmem_to_hbm [thread:$0]  %s607, 256, %s605, %s593, 128, 128, 8
        $region56: #{tpu_custom_call.1} parent=39 // pred_fallthru
          _
      $region40: #{tpu_custom_call.1} parent=5 // pred_fallthru
        _
      %p613 = scmp.le.s32.totalorder 2, %s18
      // Predicated region
      $region57: #{tpu_custom_call.1} parent=5 // pred_check
        %p614 = pneg %p613
      $region58: #{tpu_custom_call.1} parent=5 // pred_check_branch
        %616 = sbr.rel (%p614) target = $region60
      $region59: #{tpu_custom_call.1} parent=5 // pred_region
        %s617 = ssub.s32 %s18, 2
        // Predicated region
        $region61: #{tpu_custom_call.1} parent=59 // pred_check
          %p618 = pneg %p157
        $region62: #{tpu_custom_call.1} parent=59 // pred_check_branch
          %620 = sbr.rel (%p618) target = $region64
        $region63: #{tpu_custom_call.1} parent=59 // pred_region
          %s621 = sand.u32 %s142, 1
          %s622 = scalar_lea.sflag [#allocation5], %s621
          %s623 = sand.u32 %s142, 1
          %s624 = smul.addr %s623, 16
          %s625 = scalar_lea.vmem [#allocation9], %s624
          %626 = dma.done %s622, 256
        $region64: #{tpu_custom_call.1} parent=59 // pred_fallthru
          _
      $region60: #{tpu_custom_call.1} parent=5 // pred_fallthru
        _
    $region6: #{tpu_custom_call.1} parent=1 // loop_footer
      %s22 = sadd.s32 1, %s18
    $region7: #{tpu_custom_call.1} parent=1 // loop_footer_branch
      %17 = sbr.rel target = $region3
    $region8: #{tpu_custom_call.1} parent=1 // loop_exit
      _
    %627 = vsyncpa [#allocation4], 1
    %s628 = scalar_lea.sflag [#allocation4], 1
    %629 = vsyncpa %s628, 1
    %630 = vsyncpa [#allocation7], 1
    %631 = vsyncpa [#allocation5], 1
    %s632 = scalar_lea.sflag [#allocation5], 1
    %633 = vsyncpa %s632, 1

</llo_original>
